<compile_context>
chip_gen: v5e
topology: v5e:2x2
jax: 0.10.0
libtpu: 0.0.40
codegen_flags: <defaults>
</compile_context>

<pallas_src>
import jax
import jax.numpy as jnp
from jax.experimental import pallas as pl
from jax.experimental.pallas import tpu as pltpu

IN_DIM = 2
H1 = 64
H2 = 128
OUT_DIM = 3
OUT_PAD = 8                     # narrow padded output width (sliced back to OUT_DIM)
TB_MAX = 4096                   # batch tile cap (multiple of 8 sublanes)
VMEM_LIMIT_BYTES = 48 * 1024 * 1024   # explicit scoped-VMEM budget (covers v5e default 16 MiB)


def _round_up(n, m):
    return ((n + m - 1) // m) * m


def _pick_tb(B):
    """Pick the batch tile: big enough to amortize per-step overhead, >=2 grid steps
    once B > 8 (so v7x's two TensorCores both get work), and an exact divisor of B
    when one is cheap to find (skips the wrapper-side jnp.pad copy of x)."""
    half = _round_up(max(-(-B // 2), 8), 8)        # ceil(B/2), >= 8, multiple of 8
    tb = min(TB_MAX, half)
    if B % 8 == 0:
        base_steps = -(-B // tb)
        for cand in range(tb, 7, -8):              # trace-time Python loop, tiny
            if B % cand == 0 and (B // cand) <= 2 * base_steps:
                return cand
    return tb


def mlp_kernel(x_ref, w1_ref, b1_ref, w2_ref, b2_ref, w3_ref, b3_ref, o_ref):
    x = x_ref[...]                                      # (TB, IN_DIM) f32

    # ---- Layer 1 on the VPU: K=IN_DIM is tiny, broadcast FMAs beat an MXU pass.
    acc = x[:, 0:1] * w1_ref[0:1, :]
    for k in range(1, IN_DIM):
        acc = acc + x[:, k:k + 1] * w1_ref[k:k + 1, :]
    h1 = jnp.maximum(acc + b1_ref[...], 0.0)            # f32 element-wise

    # ---- Layer 2 on the MXU: bf16 operands, f32 accumulation; bias/ReLU in f32.
    h2 = jnp.dot(h1.astype(jnp.bfloat16), w2_ref[...],
                 preferred_element_type=jnp.float32) + b2_ref[...]
    h2 = jnp.maximum(h2, 0.0)

    # ---- Layer 3 on the MXU; output is only OUT_PAD(=8) lanes wide -> 16x less writeback.
    out = jnp.dot(h2.astype(jnp.bfloat16), w3_ref[...],
                  preferred_element_type=jnp.float32) + b3_ref[...]
    o_ref[...] = out.astype(o_ref.dtype)


def classifier_forward(x, params):
    """x: (B, IN_DIM) float32. params: dict of pre-transposed weights/biases."""
    w1, b1, w2, b2, w3, b3 = (
        params["w1"], params["b1"], params["w2"],
        params["b2"], params["w3"], params["b3"],
    )
    B = x.shape[0]
    TB = _pick_tb(B)
    Bp = pl.cdiv(B, TB) * TB                   # padded batch (== B when TB divides B)
    if Bp != B:
        x = jnp.pad(x, ((0, Bp - B), (0, 0)))  # zero-pad last tile; sliced off below
    grid = (Bp // TB,)

    flops = 2 * Bp * (IN_DIM * H1 + H1 * H2 + H2 * OUT_PAD)
    param_bytes = (w1.size * 4 + b1.size * 4 + w2.size * 2 + b2.size * 4
                   + w3.size * 2 + b3.size * 4)
    bytes_accessed = Bp * (IN_DIM * 4 + OUT_PAD * 4) + param_bytes

    out_padded = pl.pallas_call(
        mlp_kernel,
        out_shape=jax.ShapeDtypeStruct((Bp, OUT_PAD), jnp.float32),
        grid_spec=pltpu.PrefetchScalarGridSpec(
            num_scalar_prefetch=0,
            grid=grid,
            in_specs=[
                pl.BlockSpec((TB, IN_DIM), lambda i: (i, 0)),   # x: streamed per tile
                # parameters: constant block index -> stay resident in VMEM
                pl.BlockSpec((IN_DIM, H1), lambda i: (0, 0)),   # w1 (f32, VPU path)
                pl.BlockSpec((1, H1), lambda i: (0, 0)),        # b1 (f32)
                pl.BlockSpec((H1, H2), lambda i: (0, 0)),       # w2 (bf16)
                pl.BlockSpec((1, H2), lambda i: (0, 0)),        # b2 (f32)
                pl.BlockSpec((H2, OUT_PAD), lambda i: (0, 0)),  # w3 padded to 8 (bf16)
                pl.BlockSpec((1, OUT_PAD), lambda i: (0, 0)),   # b3 padded to 8 (f32)
            ],
            out_specs=pl.BlockSpec((TB, OUT_PAD), lambda i: (i, 0)),
        ),
        compiler_params=pltpu.CompilerParams(
            dimension_semantics=("parallel",),
            vmem_limit_bytes=VMEM_LIMIT_BYTES),
        cost_estimate=pl.CostEstimate(
            flops=flops, transcendentals=0, bytes_accessed=bytes_accessed),
    )(x, w1, b1, w2, b2, w3, b3)

    return out_padded[:B, :OUT_DIM]


def init_params(key):
    """Deterministic synthetic parameters (same shapes as the nn.Linear layers),
    stored transposed: W_k has shape (in_features, out_features). The MXU-bound
    weights (w2, w3) are stored in bf16; w3/b3 are zero-padded to OUT_PAD columns."""
    ks = jax.random.split(key, 6)

    def lin(kw, kb, fan_in, fan_out):
        bound = 1.0 / jnp.sqrt(fan_in)
        w = jax.random.uniform(kw, (fan_in, fan_out), jnp.float32, -bound, bound)
        b = jax.random.uniform(kb, (1, fan_out), jnp.float32, -bound, bound)
        return w, b

    w1, b1 = lin(ks[0], ks[1], IN_DIM, H1)
    w2, b2 = lin(ks[2], ks[3], H1, H2)
    w3, b3 = lin(ks[4], ks[5], H2, OUT_DIM)

    # Pad layer-3 to OUT_PAD columns (zeros in the padded columns are inert).
    w3p = jnp.zeros((H2, OUT_PAD), jnp.float32).at[:, :OUT_DIM].set(w3)
    b3p = jnp.zeros((1, OUT_PAD), jnp.float32).at[:, :OUT_DIM].set(b3)

    return {
        "w1": w1, "b1": b1,
        "w2": w2.astype(jnp.bfloat16), "b2": b2,
        "w3": w3p.astype(jnp.bfloat16), "b3": b3p,
    }


def reference_forward(x, p):
    # Pure-JAX reference (f32 math; bf16-stored weights are promoted to f32).
    h = jnp.maximum(x @ p["w1"].astype(jnp.float32) + p["b1"], 0.0)
    h = jnp.maximum(h @ p["w2"].astype(jnp.float32) + p["b2"], 0.0)
    out = h @ p["w3"].astype(jnp.float32) + p["b3"]
    return out[:, :OUT_DIM]


if __name__ == "__main__":
    key = jax.random.PRNGKey(0)
    k_param, k_x = jax.random.split(key)
    params = init_params(k_param)

    B = 8
    x = jax.random.normal(k_x, (B, IN_DIM), jnp.float32)

    out = classifier_forward(x, params)
    out = jax.block_until_ready(out)

    ref = reference_forward(x, params)
    assert out.shape == (B, OUT_DIM)
    # bf16 MXU operands with f32 accumulation -> slightly looser tolerance than pure f32.
    assert jnp.allclose(out, ref, atol=5e-2, rtol=5e-2), (
        f"max abs err = {jnp.max(jnp.abs(out - ref))}")

    print("KERNEL_OK")
</pallas_src>

<mosaic_0001>
module attributes {stable_mosaic.version = 11 : i64} {
  func.func @mlp_kernel(%arg0: i32, %arg1: memref<8x2xf32, #tpu.memory_space<vmem>>, %arg2: memref<2x64xf32, #tpu.memory_space<vmem>>, %arg3: memref<1x64xf32, #tpu.memory_space<vmem>>, %arg4: memref<64x128xbf16, #tpu.memory_space<vmem>>, %arg5: memref<1x128xf32, #tpu.memory_space<vmem>>, %arg6: memref<128x8xbf16, #tpu.memory_space<vmem>>, %arg7: memref<1x8xf32, #tpu.memory_space<vmem>>, %arg8: memref<8x8xf32, #tpu.memory_space<vmem>>) attributes {dimension_semantics = [#tpu.dimension_semantics<parallel>], iteration_bounds = array<i64: 1>, scalar_prefetch = 0 : i64, scratch_operands = 0 : i64, tpu.core_type = #tpu.core_type<tc>, window_params = [{transform_indices = @transform_0, window_bounds = array<i64: 8, 2>}, {pipeline_mode = #tpu.pipeline_mode<synchronous>, transform_indices = @transform_1, window_bounds = array<i64: 2, 64>}, {pipeline_mode = #tpu.pipeline_mode<synchronous>, transform_indices = @transform_2, window_bounds = array<i64: 1, 64>}, {pipeline_mode = #tpu.pipeline_mode<synchronous>, transform_indices = @transform_3, window_bounds = array<i64: 64, 128>}, {pipeline_mode = #tpu.pipeline_mode<synchronous>, transform_indices = @transform_4, window_bounds = array<i64: 1, 128>}, {pipeline_mode = #tpu.pipeline_mode<synchronous>, transform_indices = @transform_5, window_bounds = array<i64: 128, 8>}, {pipeline_mode = #tpu.pipeline_mode<synchronous>, transform_indices = @transform_6, window_bounds = array<i64: 1, 8>}, {transform_indices = @transform_7, window_bounds = array<i64: 8, 8>}]} {
    %c0 = arith.constant 0 : index
    %c0_0 = arith.constant 0 : index
    %0 = vector.load %arg1[%c0, %c0_0] : memref<8x2xf32, #tpu.memory_space<vmem>>, vector<8x2xf32>
    %1 = vector.extract_strided_slice %0 {offsets = [0, 0], sizes = [8, 1], strides = [1, 1]} : vector<8x2xf32> to vector<8x1xf32>
    %c0_1 = arith.constant 0 : index
    %c0_2 = arith.constant 0 : index
    %2 = vector.load %arg2[%c0_1, %c0_2] : memref<2x64xf32, #tpu.memory_space<vmem>>, vector<1x64xf32>
    %3 = vector.broadcast %1 : vector<8x1xf32> to vector<8x64xf32>
    %4 = vector.broadcast %2 : vector<1x64xf32> to vector<8x64xf32>
    %5 = arith.mulf %3, %4 : vector<8x64xf32>
    %6 = vector.extract_strided_slice %0 {offsets = [0, 1], sizes = [8, 1], strides = [1, 1]} : vector<8x2xf32> to vector<8x1xf32>
    %c1 = arith.constant 1 : index
    %c0_3 = arith.constant 0 : index
    %7 = vector.load %arg2[%c1, %c0_3] : memref<2x64xf32, #tpu.memory_space<vmem>>, vector<1x64xf32>
    %8 = vector.broadcast %6 : vector<8x1xf32> to vector<8x64xf32>
    %9 = vector.broadcast %7 : vector<1x64xf32> to vector<8x64xf32>
    %10 = arith.mulf %8, %9 : vector<8x64xf32>
    %11 = arith.addf %5, %10 : vector<8x64xf32>
    %c0_4 = arith.constant 0 : index
    %c0_5 = arith.constant 0 : index
    %12 = vector.load %arg3[%c0_4, %c0_5] : memref<1x64xf32, #tpu.memory_space<vmem>>, vector<1x64xf32>
    %13 = vector.broadcast %12 : vector<1x64xf32> to vector<8x64xf32>
    %14 = arith.addf %11, %13 : vector<8x64xf32>
    %cst = arith.constant 0.000000e+00 : f32
    %15 = vector.broadcast %cst : f32 to vector<8x64xf32>
    %16 = arith.maximumf %14, %15 : vector<8x64xf32>
    %17 = arith.truncf %16 : vector<8x64xf32> to vector<8x64xbf16>
    %c0_6 = arith.constant 0 : index
    %c0_7 = arith.constant 0 : index
    %18 = vector.load %arg4[%c0_6, %c0_7] : memref<64x128xbf16, #tpu.memory_space<vmem>>, vector<64x128xbf16>
    %cst_8 = arith.constant dense<0.000000e+00> : vector<8x128xf32>
    %19 = tpu.matmul %17, %18, %cst_8 {dimension_numbers = #tpu.dot_dimension_numbers<[1], [0], [0], [1], [0, 0, 1, 1], [], []>} : vector<8x64xbf16>, vector<64x128xbf16>, vector<8x128xf32> -> vector<8x128xf32>
    %c0_9 = arith.constant 0 : index
    %c0_10 = arith.constant 0 : index
    %20 = vector.load %arg5[%c0_9, %c0_10] : memref<1x128xf32, #tpu.memory_space<vmem>>, vector<1x128xf32>
    %21 = vector.broadcast %20 : vector<1x128xf32> to vector<8x128xf32>
    %22 = arith.addf %19, %21 : vector<8x128xf32>
    %cst_11 = arith.constant 0.000000e+00 : f32
    %23 = vector.broadcast %cst_11 : f32 to vector<8x128xf32>
    %24 = arith.maximumf %22, %23 : vector<8x128xf32>
    %25 = arith.truncf %24 : vector<8x128xf32> to vector<8x128xbf16>
    %c0_12 = arith.constant 0 : index
    %c0_13 = arith.constant 0 : index
    %26 = vector.load %arg6[%c0_12, %c0_13] : memref<128x8xbf16, #tpu.memory_space<vmem>>, vector<128x8xbf16>
    %cst_14 = arith.constant dense<0.000000e+00> : vector<8x8xf32>
    %27 = tpu.matmul %25, %26, %cst_14 {dimension_numbers = #tpu.dot_dimension_numbers<[1], [0], [0], [1], [0, 0, 1, 1], [], []>} : vector<8x128xbf16>, vector<128x8xbf16>, vector<8x8xf32> -> vector<8x8xf32>
    %c0_15 = arith.constant 0 : index
    %c0_16 = arith.constant 0 : index
    %28 = vector.load %arg7[%c0_15, %c0_16] : memref<1x8xf32, #tpu.memory_space<vmem>>, vector<1x8xf32>
    %29 = vector.broadcast %28 : vector<1x8xf32> to vector<8x8xf32>
    %30 = arith.addf %27, %29 : vector<8x8xf32>
    %c0_17 = arith.constant 0 : index
    %c0_18 = arith.constant 0 : index
    %31 = vector.load %arg8[%c0_17, %c0_18] : memref<8x8xf32, #tpu.memory_space<vmem>>, vector<8x8xf32>
    tpu.vector_store %arg8[%c0_17, %c0_18], %30 {strides = array<i32>} : memref<8x8xf32, #tpu.memory_space<vmem>>, vector<8x8xf32>,
    return
  }
  func.func @transform_0(%arg0: i32) -> (i32, i32) {
    %c0_i32 = arith.constant 0 : i32
    %c0_i32_0 = arith.constant 0 : i32
    return %arg0, %c0_i32 : i32, i32
  }
  func.func @transform_1(%arg0: i32) -> (i32, i32) {
    %c0_i32 = arith.constant 0 : i32
    %c0_i32_0 = arith.constant 0 : i32
    %c0_i32_1 = arith.constant 0 : i32
    return %c0_i32, %c0_i32_0 : i32, i32
  }
  func.func @transform_2(%arg0: i32) -> (i32, i32) {
    %c0_i32 = arith.constant 0 : i32
    %c0_i32_0 = arith.constant 0 : i32
    %c0_i32_1 = arith.constant 0 : i32
    return %c0_i32, %c0_i32_0 : i32, i32
  }
  func.func @transform_3(%arg0: i32) -> (i32, i32) {
    %c0_i32 = arith.constant 0 : i32
    %c0_i32_0 = arith.constant 0 : i32
    %c0_i32_1 = arith.constant 0 : i32
    return %c0_i32, %c0_i32_0 : i32, i32
  }
  func.func @transform_4(%arg0: i32) -> (i32, i32) {
    %c0_i32 = arith.constant 0 : i32
    %c0_i32_0 = arith.constant 0 : i32
    %c0_i32_1 = arith.constant 0 : i32
    return %c0_i32, %c0_i32_0 : i32, i32
  }
  func.func @transform_5(%arg0: i32) -> (i32, i32) {
    %c0_i32 = arith.constant 0 : i32
    %c0_i32_0 = arith.constant 0 : i32
    %c0_i32_1 = arith.constant 0 : i32
    return %c0_i32, %c0_i32_0 : i32, i32
  }
  func.func @transform_6(%arg0: i32) -> (i32, i32) {
    %c0_i32 = arith.constant 0 : i32
    %c0_i32_0 = arith.constant 0 : i32
    %c0_i32_1 = arith.constant 0 : i32
    return %c0_i32, %c0_i32_0 : i32, i32
  }
  func.func @transform_7(%arg0: i32) -> (i32, i32) {
    %c0_i32 = arith.constant 0 : i32
    %c0_i32_0 = arith.constant 0 : i32
    return %arg0, %c0_i32 : i32, i32
  }
}

</mosaic_0001>

<llo_original>
// kernel: tpu_custom_call.1
$region0: #{tpu_custom_call.1}
  #allocation0 [shape = 'u32[]', space=smem, size = 0x4, offset = 0x4, fixed_abs, tag = 'smem constant byte address 0x4 - core index']
  #allocation1 [shape = 'u32[72,128]{1,0:T(1,128)}', space=vmem, size = 0x9000, scoped, tag = 'internal scratch']
  %s0 = inlined_call_operand.vmem [shape: f32[8,2], index: 0, kind: input, shape index: {}]
  %s1 = inlined_call_operand.vmem [shape: f32[2,64], index: 1, kind: input, shape index: {}]
  %s2 = inlined_call_operand.vmem [shape: f32[1,64], index: 2, kind: input, shape index: {}]
  %s3 = inlined_call_operand.vmem [shape: bf16[64,128], index: 3, kind: input, shape index: {}]
  %s4 = inlined_call_operand.vmem [shape: f32[1,128], index: 4, kind: input, shape index: {}]
  %s5 = inlined_call_operand.vmem [shape: bf16[128,8], index: 5, kind: input, shape index: {}]
  %s6 = inlined_call_operand.vmem [shape: f32[1,8], index: 6, kind: input, shape index: {}]
  %s7 = inlined_call_operand.hbm [shape: f32[8,8], index: 7, kind: output, shape index: {}]
  %s8 = sld [smem:[#allocation0]]
  $region38: #{tpu_custom_call.1} parent=0
    _
  %s10 = ssub.s32 1, %s8
  %s11 = scalar_select 0, %s10, %s8
  $region1: #{tpu_custom_call.1} parent=0
    #allocation2 [shape = 'u8[4096]{0}', space=vmem, size = 0x1000, scoped, tag = 'output window, operand 0, single buffered']
    #allocation3 [shape = 's32[1]{0}', space=sflag, size = 0x4, scoped, tag = 'scoped memory for tpu_custom_call.1']
    %12 = vsyncpa [#allocation3], 0
    // Predicated region
    $region2: #{tpu_custom_call.1} parent=1 // pred_check
      _
    $region3: #{tpu_custom_call.1} parent=1 // pred_check_branch
      %14 = sbr.rel (0) target = $region5
    $region4: #{tpu_custom_call.1} parent=1 // pred_region
      _
    $region5: #{tpu_custom_call.1} parent=1 // pred_fallthru
      _
    // Predicated region
    $region6: #{tpu_custom_call.1} parent=1 // pred_check
      _
    $region7: #{tpu_custom_call.1} parent=1 // pred_check_branch
      %16 = sbr.rel (0) target = $region9
    $region8: #{tpu_custom_call.1} parent=1 // pred_region
      _
    $region9: #{tpu_custom_call.1} parent=1 // pred_fallthru
      _
    // Predicated region
    $region10: #{tpu_custom_call.1} parent=1 // pred_check
      _
    $region11: #{tpu_custom_call.1} parent=1 // pred_check_branch
      %18 = sbr.rel (0) target = $region13
    $region12: #{tpu_custom_call.1} parent=1 // pred_region
      _
    $region13: #{tpu_custom_call.1} parent=1 // pred_fallthru
      _
    // Predicated region
    $region14: #{tpu_custom_call.1} parent=1 // pred_check
      _
    $region15: #{tpu_custom_call.1} parent=1 // pred_check_branch
      %20 = sbr.rel (0) target = $region17
    $region16: #{tpu_custom_call.1} parent=1 // pred_region
      _
    $region17: #{tpu_custom_call.1} parent=1 // pred_fallthru
      _
    // Predicated region
    $region18: #{tpu_custom_call.1} parent=1 // pred_check
      _
    $region19: #{tpu_custom_call.1} parent=1 // pred_check_branch
      %22 = sbr.rel (0) target = $region21
    $region20: #{tpu_custom_call.1} parent=1 // pred_region
      _
    $region21: #{tpu_custom_call.1} parent=1 // pred_fallthru
      _
    // Predicated region
    $region22: #{tpu_custom_call.1} parent=1 // pred_check
      _
    $region23: #{tpu_custom_call.1} parent=1 // pred_check_branch
      %24 = sbr.rel (0) target = $region25
    $region24: #{tpu_custom_call.1} parent=1 // pred_region
      _
    $region25: #{tpu_custom_call.1} parent=1 // pred_fallthru
      _
    // Predicated region
    $region26: #{tpu_custom_call.1} parent=1 // pred_check
      _
    $region27: #{tpu_custom_call.1} parent=1 // pred_check_branch
      %26 = sbr.rel (0) target = $region29
    $region28: #{tpu_custom_call.1} parent=1 // pred_region
      _
    $region29: #{tpu_custom_call.1} parent=1 // pred_fallthru
      _
    %v28 = vld [vmem:[%s0] sm:$0xff]
    %v29 = vld [vmem:[%s1] sm:$0x1]
    %31 = vset.pattern.permute.xlu0 0
    %32 = vperm.xlu0 %31, %v28
    %v33 = vpop.permute.xlu0 %32
    %v35 = vperm.slane %v29, 0
    %v36 = vmul.f32 %v33, %v35
    %v37 = vld [vmem:[%s1 + $0x1] sm:$0x1]
    %38 = vset.pattern.permute.xlu0 1
    %39 = vperm.xlu0 %38, %v28
    %v40 = vpop.permute.xlu0 %39
    %v42 = vperm.slane %v37, 0
    %v43 = vmul.f32 %v40, %v42
    %v44 = vadd.f32 %v36, %v43
    %v45 = vld [vmem:[%s2] sm:$0x1]
    %v47 = vperm.slane %v45, 0
    %v49 = vadd.f32 %v44, %v47
    %v50 = vmax.f32 %v49, 0.0
    %v51 = vpack.c.bf16 %v50, %v50
    %v52 = vld [vmem:[%s3] sm:$0xf]
    %v53 = vld [vmem:[%s3 + $0x4] sm:$0xf]
    %v54 = vld [vmem:[%s3 + $0x8] sm:$0xf]
    %v55 = vld [vmem:[%s3 + $0xc] sm:$0xf]
    %v56 = vld [vmem:[%s3 + $0x10] sm:$0xf]
    %v57 = vld [vmem:[%s3 + $0x14] sm:$0xf]
    %v58 = vld [vmem:[%s3 + $0x18] sm:$0xf]
    %v59 = vld [vmem:[%s3 + $0x1c] sm:$0xf]
    %v60 = vld [vmem:[%s4] sm:$0x1]
    %v62 = vperm.slane %v60, 0
    %v72 = vunpack.c.l.b16 %v52
    %v73 = vunpack.c.l.b16 %v53
    %v74 = vunpack.c.l.b16 %v54
    %v75 = vunpack.c.l.b16 %v55
    %v76 = vunpack.c.l.b16 %v56
    %v77 = vunpack.c.l.b16 %v57
    %v78 = vunpack.c.l.b16 %v58
    %v79 = vunpack.c.l.b16 %v59
    %v80 = vpack.c.b16 %v73, %v72
    %v81 = vpack.c.b16 %v75, %v74
    %v82 = vpack.c.b16 %v77, %v76
    %v83 = vpack.c.b16 %v79, %v78
    %vm88 = vcmask 523264
    %v90 = vsel %vm88, %v51, 0
    %92 = vmatpush.bf16.msra.mxu0 0
    %93 = vmatpush.bf16.msra.mxu0 0
    %94 = vmatpush.bf16.msra.mxu0 0
    %95 = vmatpush.bf16.msra.mxu0 0
    %96 = vmatpush.bf16.msra.mxu0 %v83
    %97 = vmatpush.bf16.msra.mxu0 %v82
    %98 = vmatpush.bf16.msra.mxu0 %v81
    %99 = vmatpush.bf16.msra.mxu0 %v80
    %100 = vmatmul.bf16.gmra.mxu0 %v90
    %v101 = vpop.f32.mrf.mxu0
    %v102 = vadd.f32 %v62, %v101
    %v103 = vpop.f32.mrf.mxu0
    %104 = vdwg.mxu0
    %v105 = vmax.f32 %v102, 0.0
    %v106 = vpack.c.bf16 %v105, %v105
    %v107 = vld [vmem:[%s5] sm:$0xf]
    %v108 = vld [vmem:[%s5 + $0x4] sm:$0xf]
    %v109 = vld [vmem:[%s5 + $0x8] sm:$0xf]
    %v110 = vld [vmem:[%s5 + $0xc] sm:$0xf]
    %v111 = vld [vmem:[%s5 + $0x10] sm:$0xf]
    %v112 = vld [vmem:[%s5 + $0x14] sm:$0xf]
    %v113 = vld [vmem:[%s5 + $0x18] sm:$0xf]
    %v114 = vld [vmem:[%s5 + $0x1c] sm:$0xf]
    %v115 = vld [vmem:[%s5 + $0x20] sm:$0xf]
    %v116 = vld [vmem:[%s5 + $0x24] sm:$0xf]
    %v117 = vld [vmem:[%s5 + $0x28] sm:$0xf]
    %v118 = vld [vmem:[%s5 + $0x2c] sm:$0xf]
    %v119 = vld [vmem:[%s5 + $0x30] sm:$0xf]
    %v120 = vld [vmem:[%s5 + $0x34] sm:$0xf]
    %v121 = vld [vmem:[%s5 + $0x38] sm:$0xf]
    %v122 = vld [vmem:[%s5 + $0x3c] sm:$0xf]
    %v123 = vld [vmem:[%s6] sm:$0x1]
    %v125 = vperm.slane %v123, 0
    %v143 = vunpack.c.l.b16 %v107
    %v144 = vunpack.c.l.b16 %v108
    %v145 = vunpack.c.l.b16 %v109
    %v146 = vunpack.c.l.b16 %v110
    %v147 = vunpack.c.l.b16 %v111
    %v148 = vunpack.c.l.b16 %v112
    %v149 = vunpack.c.l.b16 %v113
    %v150 = vunpack.c.l.b16 %v114
    %v151 = vunpack.c.l.b16 %v115
    %v152 = vunpack.c.l.b16 %v116
    %v153 = vunpack.c.l.b16 %v117
    %v154 = vunpack.c.l.b16 %v118
    %v155 = vunpack.c.l.b16 %v119
    %v156 = vunpack.c.l.b16 %v120
    %v157 = vunpack.c.l.b16 %v121
    %v158 = vunpack.c.l.b16 %v122
    %v159 = vpack.c.b16 %v144, %v143
    %v160 = vpack.c.b16 %v146, %v145
    %v161 = vpack.c.b16 %v148, %v147
    %v162 = vpack.c.b16 %v150, %v149
    %v163 = vpack.c.b16 %v152, %v151
    %v164 = vpack.c.b16 %v154, %v153
    %v165 = vpack.c.b16 %v156, %v155
    %v166 = vpack.c.b16 %v158, %v157
    %175 = vmatpush.bf16.msra.mxu0 %v166
    %176 = vmatpush.bf16.msra.mxu0 %v165
    %177 = vmatpush.bf16.msra.mxu0 %v164
    %178 = vmatpush.bf16.msra.mxu0 %v163
    %179 = vmatpush.bf16.msra.mxu0 %v162
    %180 = vmatpush.bf16.msra.mxu0 %v161
    %181 = vmatpush.bf16.msra.mxu0 %v160
    %182 = vmatpush.bf16.msra.mxu0 %v159
    %183 = vmatmul.bf16.gmra.mxu0 %v106
    %v184 = vpop.f32.mrf.mxu0
    %v185 = vadd.f32 %v125, %v184
    %v186 = vpop.f32.mrf.mxu0
    %187 = vdwg.mxu0
    %vm188 = vcmask 64512
    %189 = vst.msk [vmem:[#allocation2] sm:$0xff] %vm188, %v185
    // Predicated region
    $region30: #{tpu_custom_call.1} parent=1 // pred_check
      _
    $region31: #{tpu_custom_call.1} parent=1 // pred_check_branch
      %191 = sbr.rel (0) target = $region33
    $region32: #{tpu_custom_call.1} parent=1 // pred_region
      %193 = vsyncadd [#allocation3], 0
      %s195 = sshll.u32 [#allocation2], 4
      %s196 = int_to_ptr.vmem [resolvable:$true] %s195
      %s197 = sshll.u32 %s7, 4
      %s198 = int_to_ptr.hbm [resolvable:$true] %s197
      %200 = dma.vmem_to_hbm [thread:$0]  %s196, 128, %s198, [#allocation3]
    $region33: #{tpu_custom_call.1} parent=1 // pred_fallthru
      _
    // Predicated region
    $region34: #{tpu_custom_call.1} parent=1 // pred_check
      _
    $region35: #{tpu_custom_call.1} parent=1 // pred_check_branch
      %202 = sbr.rel (0) target = $region37
    $region36: #{tpu_custom_call.1} parent=1 // pred_region
      %204 = dma.done [#allocation3], 128
    $region37: #{tpu_custom_call.1} parent=1 // pred_fallthru
      _
    %205 = vsyncpa [#allocation3], 1

</llo_original>
